<compile_context>
chip_gen: v5e
topology: v5e:2x2
jax: 0.10.0
libtpu: 0.0.40
codegen_flags: <defaults>
</compile_context>

<pallas_src>
import functools

import jax
import jax.numpy as jnp
from jax import lax
from jax.experimental import pallas as pl
from jax.experimental.pallas import tpu as pltpu

_LANES = 128           # TPU vreg lane width
_MAX_TILE_ROWS = 1024  # rows per grid step: (1024,128) f32 tile = 512 KiB


def _round_up(x, m):
    return ((x + m - 1) // m) * m


def _row_alignment(*dtypes):
    """Minimum sublane multiple so every input's (tr,128) block is a legal tile."""
    min_bytes = min(jnp.dtype(d).itemsize for d in dtypes)
    return max(8, 32 // int(min_bytes))  # f32 -> 8, bf16 -> 16, int8 -> 32


def _fused_focal_loss_kernel(*refs, num_streams, gamma, use_logits, tr, tps,
                             valid_rows, needs_row_mask):
    """One (tr,128) tile for `num_streams` logit streams sharing one label tile.

    refs = (x_0, ..., x_{S-1}, z, out); out block (1, S, 8, 128) is the resident
    accumulator (its block index depends only on the parallel grid axis).
    """
    x_refs = refs[:num_streams]
    z_ref = refs[num_streams]
    out_ref = refs[num_streams + 1]

    i = pl.program_id(1)

    @pl.when(i == 0)
    def _init():
        out_ref[...] = jnp.zeros_like(out_ref)

    # Label tile loaded ONCE and shared by all streams (bf16/int8 cast in-kernel).
    z = z_ref[...].astype(jnp.float32)

    if needs_row_mask:
        # Ragged last tile: rows >= valid_rows hold unspecified data -> zero them.
        c = pl.program_id(0)
        row0 = (c * tps + i) * tr
        ridx = row0 + lax.broadcasted_iota(jnp.int32, (tr, _LANES), 0)
        row_mask = ridx < valid_rows
    else:
        row_mask = None

    for s in range(num_streams):  # static unroll; streams are independent -> ILP
        x = x_refs[s][...].astype(jnp.float32)
        if use_logits:
            # Numerically-stable BCE-with-logits (matches torch BCEWithLogits 'none').
            bce = jnp.maximum(x, 0.0) - x * z + jnp.log1p(jnp.exp(-jnp.abs(x)))
        else:
            # Probability inputs; PyTorch clamps the log terms at -100.
            log_x = jnp.maximum(jnp.log(x), -100.0)
            log_1mx = jnp.maximum(jnp.log(1.0 - x), -100.0)
            bce = -(z * log_x + (1.0 - z) * log_1mx)

        pt = jnp.exp(-bce)          # exact path (no approx reciprocal)
        omp = 1.0 - pt
        g = float(gamma)
        if g == 0.0:
            mod = jnp.ones_like(omp)
        elif g == float(int(g)) and 0 < int(g) <= 8:
            mod = omp               # integer power via repeated mul (no exp/log pow)
            for _ in range(int(g) - 1):
                mod = mod * omp
        else:
            mod = omp ** g

        fl = mod * bce
        if row_mask is not None:
            fl = jnp.where(row_mask, fl, 0.0)

        # Sublane-group reduce (tr,128) -> (8,128): accumulator stays one vreg tile
        # per stream regardless of tr (keeps VMEM flat, frees vld/vst slots).
        partial = jnp.sum(fl.reshape(tr // 8, 8, _LANES), axis=0)
        out_ref[0, s] += partial


def fused_focal_loss(logits_list, labels, *, alpha=1.0, gamma=2.0,
                     use_logits=True, tile_rows=_MAX_TILE_ROWS):
    """Mean focal loss for each logits stream, fused into a single pallas_call.

    Returns a float32 array of shape (num_streams,). `labels` is shared across all
    streams and may be any dtype (bf16 / int8 one-hot cuts HBM label traffic);
    it is cast to f32 in-kernel.
    """
    logits_list = list(logits_list)
    num_streams = len(logits_list)
    assert num_streams >= 1
    for lg in logits_list:
        assert lg.shape == labels.shape, (lg.shape, labels.shape)
    count = int(labels.size)
    assert count > 0

    xs = [lg.reshape(-1) for lg in logits_list]
    z = labels.reshape(-1)
    x_dt = xs[0].dtype
    z_dt = z.dtype
    row_align = _row_alignment(x_dt, z_dt)

    # Lane-dense layout: view the flat stream as (rows, 128).
    rows = pl.cdiv(count, _LANES)
    if rows <= tile_rows:
        tr = _round_up(max(rows, row_align), row_align)     # single tile
    else:
        tr = _round_up(int(tile_rows), 32)                  # legal for f32/bf16/int8
    num_tiles = pl.cdiv(rows, tr)
    padded_rows = tr if num_tiles == 1 else rows

    # Pad only when the count is not lane-aligned (<= one tile in the single-tile
    # case, <= 127 elements otherwise). Pad values contribute exactly zero loss.
    needs_pad = (padded_rows * _LANES != count)
    # Ragged multi-tile tail is masked in-kernel instead of padded (no HBM copy).
    needs_row_mask = (num_tiles * tr != padded_rows)

    if needs_pad:
        pad = padded_rows * _LANES - count
        pad_x = -1e4 if use_logits else 1.0   # -> bce == 0 -> (1-pt)^g * bce == 0
        pad_z = 0.0 if use_logits else 1.0
        xs = [jnp.pad(x, (0, pad), constant_values=pad_x) for x in xs]
        z = jnp.pad(z, (0, pad), constant_values=pad_z)
    xs = [x.reshape(padded_rows, _LANES) for x in xs]
    z = z.reshape(padded_rows, _LANES)

    # v7x megacore: split the tile loop across the two TensorCores when it divides
    # evenly (no out-of-range block indices); degenerates to serial on v5e/v6e.
    c_split = 2 if (num_tiles >= 2 and num_tiles % 2 == 0) else 1
    tps = num_tiles // c_split

    kernel = functools.partial(
        _fused_focal_loss_kernel,
        num_streams=num_streams,
        gamma=float(gamma),
        use_logits=bool(use_logits),
        tr=tr,
        tps=tps,
        valid_rows=padded_rows,
        needs_row_mask=bool(needs_row_mask),
    )

    data_spec = pl.BlockSpec((tr, _LANES), lambda c, i: (c * tps + i, 0))
    in_specs = [data_spec] * (num_streams + 1)
    # Per-core accumulator rows: block index depends only on the parallel axis,
    # so the output block is resident across the tile loop (init at i==0).
    out_specs = pl.BlockSpec((1, num_streams, 8, _LANES), lambda c, i: (c, 0, 0, 0))

    tile_elems = tr * _LANES
    x_bytes = int(jnp.dtype(x_dt).itemsize)
    z_bytes = int(jnp.dtype(z_dt).itemsize)
    out_bytes = c_split * num_streams * 8 * _LANES * 4
    working_set = 2 * tile_elems * (num_streams * x_bytes + z_bytes) + out_bytes
    vmem_limit = min(64 * 1024 * 1024, int(working_set) + 4 * 1024 * 1024)

    padded_elems = padded_rows * _LANES
    cost = pl.CostEstimate(
        flops=12 * num_streams * padded_elems,
        transcendentals=3 * num_streams * padded_elems,
        bytes_accessed=int(num_streams * padded_elems * x_bytes
                           + padded_elems * z_bytes + out_bytes),
    )

    partials = pl.pallas_call(
        kernel,
        out_shape=jax.ShapeDtypeStruct((c_split, num_streams, 8, _LANES), jnp.float32),
        grid_spec=pltpu.PrefetchScalarGridSpec(
            num_scalar_prefetch=0,
            grid=(c_split, tps),
            in_specs=in_specs,
            out_specs=out_specs,
        ),
        compiler_params=pltpu.CompilerParams(
            dimension_semantics=("parallel", "arbitrary"),
            vmem_limit_bytes=vmem_limit,
        ),
        cost_estimate=cost,
    )(*xs, z)

    # Tiny epilogue: sum per-core (8,128) partials per stream, fold alpha and 1/count.
    sums = jnp.sum(partials, axis=(0, 2, 3))                  # (num_streams,)
    return sums * jnp.float32(float(alpha) / float(count))


def focal_loss(logits, labels, **kwargs):
    """Single-stream convenience wrapper around the fused kernel."""
    return fused_focal_loss([logits], labels, **kwargs)[0]


def multi_attentional_deepfake_detection_loss(loss_pack, label, loss_cfg):
    """Forward of Multi_attentional_Deepfake_Detection_loss.

    Pure scalar dict arithmetic (weighted sum of precomputed scalar losses) — kept in
    plain JAX; the Pallas kernel above supplies the scalars in `loss_pack`.
    """
    del label  # unused, matches the PyTorch signature
    if "loss" in loss_pack:
        return loss_pack["loss"]
    loss = (loss_cfg["ENSEMBLE_LOSS_WEIGHT"] * loss_pack["ensemble_loss"]
            + loss_cfg["AUX_LOSS_WEIGHT"] * loss_pack["aux_loss"])
    if loss_cfg["AGDA_LOSS_WEIGHT"] != 0:
        loss = loss + (loss_cfg["AGDA_LOSS_WEIGHT"] * loss_pack["AGDA_ensemble_loss"]
                       + loss_cfg["MATCH_LOSS_WEIGHT"] * loss_pack["match_loss"])
    return loss


def _focal_loss_ref(logits, labels, alpha=1.0, gamma=2.0):
    x = logits.astype(jnp.float32)
    z = labels.astype(jnp.float32)
    bce = jnp.maximum(x, 0.0) - x * z + jnp.log1p(jnp.exp(-jnp.abs(x)))
    pt = jnp.exp(-bce)
    return jnp.mean(alpha * (1.0 - pt) ** gamma * bce)


if __name__ == "__main__":
    key = jax.random.PRNGKey(0)
    k1, k2, k3, k4, k5, k6 = jax.random.split(key, 6)

    # Binary deepfake classification: batch=8, 2 classes, one-hot labels.
    N, C = 8, 2
    ensemble_logits = jax.random.normal(k1, (N, C), dtype=jnp.float32)
    aux_logits = jax.random.normal(k2, (N, C), dtype=jnp.float32)
    agda_logits = jax.random.normal(k3, (N, C), dtype=jnp.float32)
    label_idx = jax.random.randint(k4, (N,), 0, C)
    # bf16 one-hot labels: exact 0/1 values, half the HBM read bytes of f32.
    labels_onehot = jax.nn.one_hot(label_idx, C, dtype=jnp.bfloat16)

    # ONE fused pallas_call computes all three focal losses (labels streamed once).
    losses = fused_focal_loss([ensemble_logits, aux_logits, agda_logits], labels_onehot)
    losses = jax.block_until_ready(losses)

    loss_pack = {
        "ensemble_loss": losses[0],
        "aux_loss": losses[1],
        "AGDA_ensemble_loss": losses[2],
        "match_loss": jnp.asarray(0.05, jnp.float32),
    }
    loss_cfg = {
        "ENSEMBLE_LOSS_WEIGHT": 1.0,
        "AUX_LOSS_WEIGHT": 0.5,
        "AGDA_LOSS_WEIGHT": 0.1,
        "MATCH_LOSS_WEIGHT": 0.1,
    }

    loss = multi_attentional_deepfake_detection_loss(loss_pack, label_idx, loss_cfg)
    loss = jax.block_until_ready(loss)

    # Pure-JAX reference mirroring the PyTorch semantics (exact pt path -> tight tol).
    lf32 = labels_onehot.astype(jnp.float32)
    ref = (loss_cfg["ENSEMBLE_LOSS_WEIGHT"] * _focal_loss_ref(ensemble_logits, lf32)
           + loss_cfg["AUX_LOSS_WEIGHT"] * _focal_loss_ref(aux_logits, lf32)
           + loss_cfg["AGDA_LOSS_WEIGHT"] * _focal_loss_ref(agda_logits, lf32)
           + loss_cfg["MATCH_LOSS_WEIGHT"] * 0.05)
    assert jnp.allclose(loss, ref, atol=1e-4, rtol=1e-4), (loss, ref)

    # Secondary check: multi-tile path with no wrapper pad, in-kernel ragged-row mask
    # and the 2-way parallel grid split (per-core partial accumulators).
    logits2 = jax.random.normal(k5, (272, 512), dtype=jnp.float32)
    labels2 = (jax.random.uniform(k6, (272, 512)) > 0.5).astype(jnp.float32)
    big = jax.block_until_ready(focal_loss(logits2, labels2))
    big_ref = _focal_loss_ref(logits2, labels2)
    assert jnp.allclose(big, big_ref, atol=1e-6, rtol=5e-4), (big, big_ref)

    # Exercise the 'loss' shortcut branch of the module forward.
    short = multi_attentional_deepfake_detection_loss({"loss": loss}, label_idx, loss_cfg)
    assert short is loss

    print("KERNEL_OK")
</pallas_src>

<mosaic_0001>
module attributes {stable_mosaic.version = 11 : i64} {
  func.func @_fused_focal_loss_kernel(%arg0: i32, %arg1: i32, %arg2: memref<16x128xf32, #tpu.memory_space<vmem>>, %arg3: memref<16x128xf32, #tpu.memory_space<vmem>>, %arg4: memref<16x128xf32, #tpu.memory_space<vmem>>, %arg5: memref<16x128xbf16, #tpu.memory_space<vmem>>, %arg6: memref<1x3x8x128xf32, #tpu.memory_space<vmem>>) attributes {dimension_semantics = [#tpu.dimension_semantics<parallel>, #tpu.dimension_semantics<arbitrary>], iteration_bounds = array<i64: 1, 1>, scalar_prefetch = 0 : i64, scratch_operands = 0 : i64, tpu.core_type = #tpu.core_type<tc>, window_params = [{transform_indices = @transform_0, window_bounds = array<i64: 16, 128>}, {transform_indices = @transform_1, window_bounds = array<i64: 16, 128>}, {transform_indices = @transform_2, window_bounds = array<i64: 16, 128>}, {transform_indices = @transform_3, window_bounds = array<i64: 16, 128>}, {transform_indices = @transform_4, window_bounds = array<i64: 1, 3, 8, 128>}]} {
    %c0_i32 = arith.constant 0 : i32
    %0 = arith.cmpi eq, %arg1, %c0_i32 : i32
    %1 = arith.extui %0 : i1 to i32
    %c0_i32_0 = arith.constant 0 : i32
    %2 = arith.cmpi ne, %1, %c0_i32_0 : i32
    scf.if %2 {
      %cst_44 = arith.constant 0.000000e+00 : f32
      %83 = vector.broadcast %cst_44 : f32 to vector<1x3x8x128xf32>
      %c0_45 = arith.constant 0 : index
      %c0_46 = arith.constant 0 : index
      %c0_47 = arith.constant 0 : index
      %c0_48 = arith.constant 0 : index
      %84 = vector.load %arg6[%c0_45, %c0_46, %c0_47, %c0_48] : memref<1x3x8x128xf32, #tpu.memory_space<vmem>>, vector<1x3x8x128xf32>
      tpu.vector_store %arg6[%c0_45, %c0_46, %c0_47, %c0_48], %83 {strides = array<i32>} : memref<1x3x8x128xf32, #tpu.memory_space<vmem>>, vector<1x3x8x128xf32>,
    } else {
    }
    %c0 = arith.constant 0 : index
    %c0_1 = arith.constant 0 : index
    %3 = vector.load %arg5[%c0, %c0_1] : memref<16x128xbf16, #tpu.memory_space<vmem>>, vector<16x128xbf16>
    %4 = arith.extf %3 : vector<16x128xbf16> to vector<16x128xf32>
    %c0_2 = arith.constant 0 : index
    %c0_3 = arith.constant 0 : index
    %5 = vector.load %arg2[%c0_2, %c0_3] : memref<16x128xf32, #tpu.memory_space<vmem>>, vector<16x128xf32>
    %cst = arith.constant 0.000000e+00 : f32
    %6 = vector.broadcast %cst : f32 to vector<16x128xf32>
    %7 = arith.maximumf %5, %6 : vector<16x128xf32>
    %8 = arith.mulf %5, %4 : vector<16x128xf32>
    %9 = arith.subf %7, %8 : vector<16x128xf32>
    %10 = math.absf %5 : vector<16x128xf32>
    %cst_4 = arith.constant 0.000000e+00 : f32
    %11 = vector.broadcast %cst_4 : f32 to vector<16x128xf32>
    %12 = arith.subf %11, %10 : vector<16x128xf32>
    %13 = math.exp %12 : vector<16x128xf32>
    %14 = math.log1p %13 : vector<16x128xf32>
    %15 = arith.addf %9, %14 : vector<16x128xf32>
    %cst_5 = arith.constant 0.000000e+00 : f32
    %16 = vector.broadcast %cst_5 : f32 to vector<16x128xf32>
    %17 = arith.subf %16, %15 : vector<16x128xf32>
    %18 = math.exp %17 : vector<16x128xf32>
    %cst_6 = arith.constant 1.000000e+00 : f32
    %19 = vector.broadcast %cst_6 : f32 to vector<16x128xf32>
    %20 = arith.subf %19, %18 : vector<16x128xf32>
    %21 = arith.mulf %20, %20 : vector<16x128xf32>
    %22 = arith.mulf %21, %15 : vector<16x128xf32>
    %23 = vector.shape_cast %22 : vector<16x128xf32> to vector<2x8x128xf32>
    %cst_7 = arith.constant dense<0.000000e+00> : vector<8x128xf32>
    %24 = vector.multi_reduction <add>, %23, %cst_7 [0] : vector<2x8x128xf32> to vector<8x128xf32>
    %c0_8 = arith.constant 0 : index
    %c0_9 = arith.constant 0 : index
    %c0_10 = arith.constant 0 : index
    %c0_11 = arith.constant 0 : index
    %25 = vector.load %arg6[%c0_8, %c0_9, %c0_10, %c0_11] : memref<1x3x8x128xf32, #tpu.memory_space<vmem>>, vector<1x1x8x128xf32>
    %26 = vector.shape_cast %25 : vector<1x1x8x128xf32> to vector<8x128xf32>
    %27 = arith.addf %26, %24 : vector<8x128xf32>
    %c0_12 = arith.constant 0 : index
    %c0_13 = arith.constant 0 : index
    %c0_14 = arith.constant 0 : index
    %c0_15 = arith.constant 0 : index
    %28 = vector.load %arg6[%c0_12, %c0_13, %c0_14, %c0_15] : memref<1x3x8x128xf32, #tpu.memory_space<vmem>>, vector<1x1x8x128xf32>
    %29 = vector.shape_cast %28 : vector<1x1x8x128xf32> to vector<8x128xf32>
    %30 = vector.shape_cast %27 : vector<8x128xf32> to vector<1x1x8x128xf32>
    tpu.vector_store %arg6[%c0_12, %c0_13, %c0_14, %c0_15], %30 {strides = array<i32>} : memref<1x3x8x128xf32, #tpu.memory_space<vmem>>, vector<1x1x8x128xf32>,
    %c0_16 = arith.constant 0 : index
    %c0_17 = arith.constant 0 : index
    %31 = vector.load %arg3[%c0_16, %c0_17] : memref<16x128xf32, #tpu.memory_space<vmem>>, vector<16x128xf32>
    %cst_18 = arith.constant 0.000000e+00 : f32
    %32 = vector.broadcast %cst_18 : f32 to vector<16x128xf32>
    %33 = arith.maximumf %31, %32 : vector<16x128xf32>
    %34 = arith.mulf %31, %4 : vector<16x128xf32>
    %35 = arith.subf %33, %34 : vector<16x128xf32>
    %36 = math.absf %31 : vector<16x128xf32>
    %cst_19 = arith.constant 0.000000e+00 : f32
    %37 = vector.broadcast %cst_19 : f32 to vector<16x128xf32>
    %38 = arith.subf %37, %36 : vector<16x128xf32>
    %39 = math.exp %38 : vector<16x128xf32>
    %40 = math.log1p %39 : vector<16x128xf32>
    %41 = arith.addf %35, %40 : vector<16x128xf32>
    %cst_20 = arith.constant 0.000000e+00 : f32
    %42 = vector.broadcast %cst_20 : f32 to vector<16x128xf32>
    %43 = arith.subf %42, %41 : vector<16x128xf32>
    %44 = math.exp %43 : vector<16x128xf32>
    %cst_21 = arith.constant 1.000000e+00 : f32
    %45 = vector.broadcast %cst_21 : f32 to vector<16x128xf32>
    %46 = arith.subf %45, %44 : vector<16x128xf32>
    %47 = arith.mulf %46, %46 : vector<16x128xf32>
    %48 = arith.mulf %47, %41 : vector<16x128xf32>
    %49 = vector.shape_cast %48 : vector<16x128xf32> to vector<2x8x128xf32>
    %cst_22 = arith.constant dense<0.000000e+00> : vector<8x128xf32>
    %50 = vector.multi_reduction <add>, %49, %cst_22 [0] : vector<2x8x128xf32> to vector<8x128xf32>
    %c0_23 = arith.constant 0 : index
    %c1 = arith.constant 1 : index
    %c0_24 = arith.constant 0 : index
    %c0_25 = arith.constant 0 : index
    %51 = vector.load %arg6[%c0_23, %c1, %c0_24, %c0_25] : memref<1x3x8x128xf32, #tpu.memory_space<vmem>>, vector<1x1x8x128xf32>
    %52 = vector.shape_cast %51 : vector<1x1x8x128xf32> to vector<8x128xf32>
    %53 = arith.addf %52, %50 : vector<8x128xf32>
    %c0_26 = arith.constant 0 : index
    %c1_27 = arith.constant 1 : index
    %c0_28 = arith.constant 0 : index
    %c0_29 = arith.constant 0 : index
    %54 = vector.load %arg6[%c0_26, %c1_27, %c0_28, %c0_29] : memref<1x3x8x128xf32, #tpu.memory_space<vmem>>, vector<1x1x8x128xf32>
    %55 = vector.shape_cast %54 : vector<1x1x8x128xf32> to vector<8x128xf32>
    %56 = vector.shape_cast %53 : vector<8x128xf32> to vector<1x1x8x128xf32>
    tpu.vector_store %arg6[%c0_26, %c1_27, %c0_28, %c0_29], %56 {strides = array<i32>} : memref<1x3x8x128xf32, #tpu.memory_space<vmem>>, vector<1x1x8x128xf32>,
    %c0_30 = arith.constant 0 : index
    %c0_31 = arith.constant 0 : index
    %57 = vector.load %arg4[%c0_30, %c0_31] : memref<16x128xf32, #tpu.memory_space<vmem>>, vector<16x128xf32>
    %cst_32 = arith.constant 0.000000e+00 : f32
    %58 = vector.broadcast %cst_32 : f32 to vector<16x128xf32>
    %59 = arith.maximumf %57, %58 : vector<16x128xf32>
    %60 = arith.mulf %57, %4 : vector<16x128xf32>
    %61 = arith.subf %59, %60 : vector<16x128xf32>
    %62 = math.absf %57 : vector<16x128xf32>
    %cst_33 = arith.constant 0.000000e+00 : f32
    %63 = vector.broadcast %cst_33 : f32 to vector<16x128xf32>
    %64 = arith.subf %63, %62 : vector<16x128xf32>
    %65 = math.exp %64 : vector<16x128xf32>
    %66 = math.log1p %65 : vector<16x128xf32>
    %67 = arith.addf %61, %66 : vector<16x128xf32>
    %cst_34 = arith.constant 0.000000e+00 : f32
    %68 = vector.broadcast %cst_34 : f32 to vector<16x128xf32>
    %69 = arith.subf %68, %67 : vector<16x128xf32>
    %70 = math.exp %69 : vector<16x128xf32>
    %cst_35 = arith.constant 1.000000e+00 : f32
    %71 = vector.broadcast %cst_35 : f32 to vector<16x128xf32>
    %72 = arith.subf %71, %70 : vector<16x128xf32>
    %73 = arith.mulf %72, %72 : vector<16x128xf32>
    %74 = arith.mulf %73, %67 : vector<16x128xf32>
    %75 = vector.shape_cast %74 : vector<16x128xf32> to vector<2x8x128xf32>
    %cst_36 = arith.constant dense<0.000000e+00> : vector<8x128xf32>
    %76 = vector.multi_reduction <add>, %75, %cst_36 [0] : vector<2x8x128xf32> to vector<8x128xf32>
    %c0_37 = arith.constant 0 : index
    %c2 = arith.constant 2 : index
    %c0_38 = arith.constant 0 : index
    %c0_39 = arith.constant 0 : index
    %77 = vector.load %arg6[%c0_37, %c2, %c0_38, %c0_39] : memref<1x3x8x128xf32, #tpu.memory_space<vmem>>, vector<1x1x8x128xf32>
    %78 = vector.shape_cast %77 : vector<1x1x8x128xf32> to vector<8x128xf32>
    %79 = arith.addf %78, %76 : vector<8x128xf32>
    %c0_40 = arith.constant 0 : index
    %c2_41 = arith.constant 2 : index
    %c0_42 = arith.constant 0 : index
    %c0_43 = arith.constant 0 : index
    %80 = vector.load %arg6[%c0_40, %c2_41, %c0_42, %c0_43] : memref<1x3x8x128xf32, #tpu.memory_space<vmem>>, vector<1x1x8x128xf32>
    %81 = vector.shape_cast %80 : vector<1x1x8x128xf32> to vector<8x128xf32>
    %82 = vector.shape_cast %79 : vector<8x128xf32> to vector<1x1x8x128xf32>
    tpu.vector_store %arg6[%c0_40, %c2_41, %c0_42, %c0_43], %82 {strides = array<i32>} : memref<1x3x8x128xf32, #tpu.memory_space<vmem>>, vector<1x1x8x128xf32>,
    return
  }
  func.func @transform_0(%arg0: i32, %arg1: i32) -> (i32, i32) {
    %c1_i32 = arith.constant 1 : i32
    %0 = arith.muli %arg0, %c1_i32 : i32
    %1 = arith.addi %0, %arg1 : i32
    %c0_i32 = arith.constant 0 : i32
    %c0_i32_0 = arith.constant 0 : i32
    return %1, %c0_i32 : i32, i32
  }
  func.func @transform_1(%arg0: i32, %arg1: i32) -> (i32, i32) {
    %c1_i32 = arith.constant 1 : i32
    %0 = arith.muli %arg0, %c1_i32 : i32
    %1 = arith.addi %0, %arg1 : i32
    %c0_i32 = arith.constant 0 : i32
    %c0_i32_0 = arith.constant 0 : i32
    return %1, %c0_i32 : i32, i32
  }
  func.func @transform_2(%arg0: i32, %arg1: i32) -> (i32, i32) {
    %c1_i32 = arith.constant 1 : i32
    %0 = arith.muli %arg0, %c1_i32 : i32
    %1 = arith.addi %0, %arg1 : i32
    %c0_i32 = arith.constant 0 : i32
    %c0_i32_0 = arith.constant 0 : i32
    return %1, %c0_i32 : i32, i32
  }
  func.func @transform_3(%arg0: i32, %arg1: i32) -> (i32, i32) {
    %c1_i32 = arith.constant 1 : i32
    %0 = arith.muli %arg0, %c1_i32 : i32
    %1 = arith.addi %0, %arg1 : i32
    %c0_i32 = arith.constant 0 : i32
    %c0_i32_0 = arith.constant 0 : i32
    return %1, %c0_i32 : i32, i32
  }
  func.func @transform_4(%arg0: i32, %arg1: i32) -> (i32, i32, i32, i32) {
    %c0_i32 = arith.constant 0 : i32
    %c0_i32_0 = arith.constant 0 : i32
    %c0_i32_1 = arith.constant 0 : i32
    %c0_i32_2 = arith.constant 0 : i32
    return %arg0, %c0_i32, %c0_i32_0, %c0_i32_1 : i32, i32, i32, i32
  }
}

</mosaic_0001>

<llo_original>
// kernel: tpu_custom_call.1
$region0: #{tpu_custom_call.1}
  #allocation0 [shape = 'u32[]', space=smem, size = 0x4, offset = 0x4, fixed_abs, tag = 'smem constant byte address 0x4 - core index']
  #allocation1 [shape = 'u32[72,128]{1,0:T(1,128)}', space=vmem, size = 0x9000, scoped, tag = 'internal scratch']
  %s0 = inlined_call_operand.hbm [shape: f32[16,128], index: 0, kind: input, shape index: {}]
  %s1 = inlined_call_operand.hbm [shape: f32[16,128], index: 1, kind: input, shape index: {}]
  %s2 = inlined_call_operand.hbm [shape: f32[16,128], index: 2, kind: input, shape index: {}]
  %s3 = inlined_call_operand.hbm [shape: bf16[16,128], index: 3, kind: input, shape index: {}]
  %s4 = inlined_call_operand.hbm [shape: f32[1,3,8,128], index: 4, kind: output, shape index: {}]
  %s5 = sld [smem:[#allocation0]]
  $region46: #{tpu_custom_call.1} parent=0
    _
  %s7 = ssub.s32 1, %s5
  %s8 = scalar_select 0, %s7, %s5
  $region1: #{tpu_custom_call.1} parent=0
    #allocation2 [shape = 'u8[8192]{0}', space=vmem, size = 0x2000, scoped, tag = 'input window, operand 0, single buffered']
    #allocation3 [shape = 's32[1]{0}', space=sflag, size = 0x4, scoped, tag = 'scoped memory for tpu_custom_call.1']
    #allocation4 [shape = 's32[1]{0}', space=sflag, size = 0x4, scoped, tag = 'scoped memory for tpu_custom_call.1']
    #allocation5 [shape = 'u8[8192]{0}', space=vmem, size = 0x2000, scoped, tag = 'input window, operand 1, single buffered']
    #allocation6 [shape = 's32[1]{0}', space=sflag, size = 0x4, scoped, tag = 'scoped memory for tpu_custom_call.1']
    #allocation7 [shape = 'u8[8192]{0}', space=vmem, size = 0x2000, scoped, tag = 'input window, operand 2, single buffered']
    #allocation8 [shape = 'u8[4096]{0}', space=vmem, size = 0x1000, scoped, tag = 'input window, operand 3, single buffered']
    #allocation9 [shape = 's32[1]{0}', space=sflag, size = 0x4, scoped, tag = 'scoped memory for tpu_custom_call.1']
    #allocation10 [shape = 'u8[12288]{0}', space=vmem, size = 0x3000, scoped, tag = 'output window, operand 0, single buffered']
    %9 = vsyncpa [#allocation3], 0
    %10 = vsyncpa [#allocation6], 0
    %11 = vsyncpa [#allocation9], 0
    %12 = vsyncpa [#allocation4], 0
    // Predicated region
    $region2: #{tpu_custom_call.1} parent=1 // pred_check
      _
    $region3: #{tpu_custom_call.1} parent=1 // pred_check_branch
      %14 = sbr.rel (0) target = $region5
    $region4: #{tpu_custom_call.1} parent=1 // pred_region
      %s15 = sadd.s32 0, 0
      %s16 = smul.u32 2, %s15
      %18 = vsyncadd [#allocation3], 0
      %s19 = smul.addr %s16, 8
      %s20 = scalar_lea.hbm %s0, %s19
      %s21 = sshll.u32 %s20, 4
      %s22 = int_to_ptr.hbm [resolvable:$true] %s21
      %s23 = sshll.u32 [#allocation2], 4
      %s24 = int_to_ptr.vmem [resolvable:$true] %s23
      %29 = dma.hbm_to_vmem [thread:$0]  %s22, 256, %s24, [#allocation3], 128, 128, 8
    $region5: #{tpu_custom_call.1} parent=1 // pred_fallthru
      _
    // Predicated region
    $region6: #{tpu_custom_call.1} parent=1 // pred_check
      _
    $region7: #{tpu_custom_call.1} parent=1 // pred_check_branch
      %31 = sbr.rel (0) target = $region9
    $region8: #{tpu_custom_call.1} parent=1 // pred_region
      %s32 = sadd.s32 0, 0
      %s33 = smul.u32 2, %s32
      %35 = vsyncadd [#allocation6], 0
      %s36 = smul.addr %s33, 8
      %s37 = scalar_lea.hbm %s1, %s36
      %s38 = sshll.u32 %s37, 4
      %s39 = int_to_ptr.hbm [resolvable:$true] %s38
      %s40 = sshll.u32 [#allocation5], 4
      %s41 = int_to_ptr.vmem [resolvable:$true] %s40
      %46 = dma.hbm_to_vmem [thread:$0]  %s39, 256, %s41, [#allocation6], 128, 128, 8
    $region9: #{tpu_custom_call.1} parent=1 // pred_fallthru
      _
    // Predicated region
    $region10: #{tpu_custom_call.1} parent=1 // pred_check
      _
    $region11: #{tpu_custom_call.1} parent=1 // pred_check_branch
      %48 = sbr.rel (0) target = $region13
    $region12: #{tpu_custom_call.1} parent=1 // pred_region
      %s49 = sadd.s32 0, 0
      %s50 = smul.u32 2, %s49
      %52 = vsyncadd [#allocation6], 0
      %s53 = smul.addr %s50, 8
      %s54 = scalar_lea.hbm %s2, %s53
      %s55 = sshll.u32 %s54, 4
      %s56 = int_to_ptr.hbm [resolvable:$true] %s55
      %s57 = sshll.u32 [#allocation7], 4
      %s58 = int_to_ptr.vmem [resolvable:$true] %s57
      %63 = dma.hbm_to_vmem [thread:$0]  %s56, 256, %s58, [#allocation6], 128, 128, 8
    $region13: #{tpu_custom_call.1} parent=1 // pred_fallthru
      _
    // Predicated region
    $region14: #{tpu_custom_call.1} parent=1 // pred_check
      _
    $region15: #{tpu_custom_call.1} parent=1 // pred_check_branch
      %65 = sbr.rel (0) target = $region17
    $region16: #{tpu_custom_call.1} parent=1 // pred_region
      %s66 = sadd.s32 0, 0
      %s67 = smul.u32 2, %s66
      %69 = vsyncadd [#allocation9], 0
      %s70 = smul.addr %s67, 4
      %s71 = scalar_lea.hbm %s3, %s70
      %s72 = sshll.u32 %s71, 4
      %s73 = int_to_ptr.hbm [resolvable:$true] %s72
      %s74 = sshll.u32 [#allocation8], 4
      %s75 = int_to_ptr.vmem [resolvable:$true] %s74
      %80 = dma.hbm_to_vmem [thread:$0]  %s73, 128, %s75, [#allocation9], 64, 64, 4
    $region17: #{tpu_custom_call.1} parent=1 // pred_fallthru
      _
    // Predicated region
    $region18: #{tpu_custom_call.1} parent=1 // pred_check
      _
    $region19: #{tpu_custom_call.1} parent=1 // pred_check_branch
      %82 = sbr.rel (0) target = $region21
    $region20: #{tpu_custom_call.1} parent=1 // pred_region
      %84 = dma.done [#allocation3], 256
    $region21: #{tpu_custom_call.1} parent=1 // pred_fallthru
      _
    // Predicated region
    $region22: #{tpu_custom_call.1} parent=1 // pred_check
      _
    $region23: #{tpu_custom_call.1} parent=1 // pred_check_branch
      %86 = sbr.rel (0) target = $region25
    $region24: #{tpu_custom_call.1} parent=1 // pred_region
      %88 = dma.done [#allocation6], 256
    $region25: #{tpu_custom_call.1} parent=1 // pred_fallthru
      _
    // Predicated region
    $region26: #{tpu_custom_call.1} parent=1 // pred_check
      _
    $region27: #{tpu_custom_call.1} parent=1 // pred_check_branch
      %90 = sbr.rel (0) target = $region29
    $region28: #{tpu_custom_call.1} parent=1 // pred_region
      %92 = dma.done [#allocation6], 256
    $region29: #{tpu_custom_call.1} parent=1 // pred_fallthru
      _
    // Predicated region
    $region30: #{tpu_custom_call.1} parent=1 // pred_check
      _
    $region31: #{tpu_custom_call.1} parent=1 // pred_check_branch
      %94 = sbr.rel (0) target = $region33
    $region32: #{tpu_custom_call.1} parent=1 // pred_region
      %96 = dma.done [#allocation9], 128
    $region33: #{tpu_custom_call.1} parent=1 // pred_fallthru
      _
    %s97 = sadd.s32 0, 0
    %s98 = smul.u32 2, %s97
    %s99 = sadd.s32 0, 0
    %s100 = smul.u32 2, %s99
    %s101 = sadd.s32 0, 0
    %s102 = smul.u32 2, %s101
    %s103 = sadd.s32 0, 0
    %s104 = smul.u32 2, %s103
    %p105 = scmp.eq.s32.totalorder 0, 0
    // Predicated region
    $region34: #{tpu_custom_call.1} parent=1 // pred_check
      %p106 = pneg %p105
    $region35: #{tpu_custom_call.1} parent=1 // pred_check_branch
      %108 = sbr.rel (%p106) target = $region37
    $region36: #{tpu_custom_call.1} parent=1 // pred_region
      %109 = vst [vmem:[#allocation10] sm:$0xff] 0.0
      %110 = vst [vmem:[#allocation10 + $0x8] sm:$0xff] 0.0
      %111 = vst [vmem:[#allocation10 + $0x10] sm:$0xff] 0.0
    $region37: #{tpu_custom_call.1} parent=1 // pred_fallthru
      _
    %v112 = vld [vmem:[#allocation8] sm:$0xf]
    %v113 = vld [vmem:[#allocation8 + $0x4] sm:$0xf]
    %v114 = vunpack.c.l.bf16 %v112
    %v115 = vunpack.c.l.bf16 %v113
    %v116 = vld [vmem:[#allocation2] sm:$0xff]
    %v117 = vld [vmem:[#allocation2 + $0x8] sm:$0xff]
    %v118 = vmax.f32 %v116, 0.0
    %v119 = vmax.f32 %v117, 0.0
    %v120 = vmul.f32 %v116, %v114
    %v121 = vmul.f32 %v117, %v115
    %v122 = vsub.f32 %v118, %v120
    %v123 = vsub.f32 %v119, %v121
    %v124 = vand.u32 2147483647, %v116
    %v125 = vand.u32 2147483647, %v117
    %v126 = vsub.f32 0.0, %v124
    %v127 = vsub.f32 0.0, %v125
    %v128 = vmul.f32 %v126, 1.442695
    %v129 = vpow.pop %v128
    %v130 = vmul.f32 %v127, 1.442695
    %v131 = vpow.pop %v130
    %v132 = vadd.f32 %v129, 1.0
    %v133 = vlog2.pop %v132
    %v134 = vmul.f32 %v133, 0.6931472
    %v135 = vmul.f32 -0.5, %v129
    %v136 = vadd.f32 %v135, 1.0
    %v137 = vmul.f32 %v136, %v129
    %v138 = vand.u32 2147483647, %v129
    %vm139 = vcmp.lt.f32.partialorder %v138, 0.0004427343
    %v140 = vsel %vm139, %v137, %v134
    %v141 = vadd.f32 %v131, 1.0
    %v142 = vlog2.pop %v141
    %v143 = vmul.f32 %v142, 0.6931472
    %v144 = vmul.f32 -0.5, %v131
    %v145 = vadd.f32 %v144, 1.0
    %v146 = vmul.f32 %v145, %v131
    %v147 = vand.u32 2147483647, %v131
    %vm148 = vcmp.lt.f32.partialorder %v147, 0.0004427343
    %v149 = vsel %vm148, %v146, %v143
    %v150 = vadd.f32 %v122, %v140
    %v151 = vadd.f32 %v123, %v149
    %v152 = vsub.f32 0.0, %v150
    %v153 = vsub.f32 0.0, %v151
    %v154 = vmul.f32 %v152, 1.442695
    %v155 = vpow.pop %v154
    %v156 = vmul.f32 %v153, 1.442695
    %v157 = vpow.pop %v156
    %v158 = vsub.f32 1.0, %v155
    %v159 = vsub.f32 1.0, %v157
    %v160 = vmul.f32 %v158, %v158
    %v161 = vmul.f32 %v159, %v159
    %v162 = vmul.f32 %v160, %v150
    %v163 = vmul.f32 %v161, %v151
    %v164 = vadd.f32 %v162, %v163
    %v165 = vld [vmem:[#allocation10] sm:$0xff]
    %v166 = vadd.f32 %v165, %v164
    %167 = vst [vmem:[#allocation10] sm:$0xff] %v166
    %v168 = vld [vmem:[#allocation5] sm:$0xff]
    %v169 = vld [vmem:[#allocation5 + $0x8] sm:$0xff]
    %v170 = vmax.f32 %v168, 0.0
    %v171 = vmax.f32 %v169, 0.0
    %v172 = vmul.f32 %v168, %v114
    %v173 = vmul.f32 %v169, %v115
    %v174 = vsub.f32 %v170, %v172
    %v175 = vsub.f32 %v171, %v173
    %v176 = vand.u32 2147483647, %v168
    %v177 = vand.u32 2147483647, %v169
    %v178 = vsub.f32 0.0, %v176
    %v179 = vsub.f32 0.0, %v177
    %v180 = vmul.f32 %v178, 1.442695
    %v181 = vpow.pop %v180
    %v182 = vmul.f32 %v179, 1.442695
    %v183 = vpow.pop %v182
    %v184 = vadd.f32 %v181, 1.0
    %v185 = vlog2.pop %v184
    %v186 = vmul.f32 %v185, 0.6931472
    %v187 = vmul.f32 -0.5, %v181
    %v188 = vadd.f32 %v187, 1.0
    %v189 = vmul.f32 %v188, %v181
    %v190 = vand.u32 2147483647, %v181
    %vm191 = vcmp.lt.f32.partialorder %v190, 0.0004427343
    %v192 = vsel %vm191, %v189, %v186
    %v193 = vadd.f32 %v183, 1.0
    %v194 = vlog2.pop %v193
    %v195 = vmul.f32 %v194, 0.6931472
    %v196 = vmul.f32 -0.5, %v183
    %v197 = vadd.f32 %v196, 1.0
    %v198 = vmul.f32 %v197, %v183
    %v199 = vand.u32 2147483647, %v183
    %vm200 = vcmp.lt.f32.partialorder %v199, 0.0004427343
    %v201 = vsel %vm200, %v198, %v195
    %v202 = vadd.f32 %v174, %v192
    %v203 = vadd.f32 %v175, %v201
    %v204 = vsub.f32 0.0, %v202
    %v205 = vsub.f32 0.0, %v203
    %v206 = vmul.f32 %v204, 1.442695
    %v207 = vpow.pop %v206
    %v208 = vmul.f32 %v205, 1.442695
    %v209 = vpow.pop %v208
    %v210 = vsub.f32 1.0, %v207
    %v211 = vsub.f32 1.0, %v209
    %v212 = vmul.f32 %v210, %v210
    %v213 = vmul.f32 %v211, %v211
    %v214 = vmul.f32 %v212, %v202
    %v215 = vmul.f32 %v213, %v203
    %v216 = vadd.f32 %v214, %v215
    %s217 = scalar_lea.vmem [#allocation10], 8
    %v218 = vld [vmem:[%s217] sm:$0xff]
    %v219 = vadd.f32 %v218, %v216
    %220 = vst [vmem:[%s217] sm:$0xff] %v219
    %v221 = vld [vmem:[#allocation7] sm:$0xff]
    %v222 = vld [vmem:[#allocation7 + $0x8] sm:$0xff]
    %v223 = vmax.f32 %v221, 0.0
    %v224 = vmax.f32 %v222, 0.0
    %v225 = vmul.f32 %v221, %v114
    %v226 = vmul.f32 %v222, %v115
    %v227 = vsub.f32 %v223, %v225
    %v228 = vsub.f32 %v224, %v226
    %v229 = vand.u32 2147483647, %v221
    %v230 = vand.u32 2147483647, %v222
    %v231 = vsub.f32 0.0, %v229
    %v232 = vsub.f32 0.0, %v230
    %v233 = vmul.f32 %v231, 1.442695
    %v234 = vpow.pop %v233
    %v235 = vmul.f32 %v232, 1.442695
    %v236 = vpow.pop %v235
    %v237 = vadd.f32 %v234, 1.0
    %v238 = vlog2.pop %v237
    %v239 = vmul.f32 %v238, 0.6931472
    %v240 = vmul.f32 -0.5, %v234
    %v241 = vadd.f32 %v240, 1.0
    %v242 = vmul.f32 %v241, %v234
    %v243 = vand.u32 2147483647, %v234
    %vm244 = vcmp.lt.f32.partialorder %v243, 0.0004427343
    %v245 = vsel %vm244, %v242, %v239
    %v246 = vadd.f32 %v236, 1.0
    %v247 = vlog2.pop %v246
    %v248 = vmul.f32 %v247, 0.6931472
    %v249 = vmul.f32 -0.5, %v236
    %v250 = vadd.f32 %v249, 1.0
    %v251 = vmul.f32 %v250, %v236
    %v252 = vand.u32 2147483647, %v236
    %vm253 = vcmp.lt.f32.partialorder %v252, 0.0004427343
    %v254 = vsel %vm253, %v251, %v248
    %v255 = vadd.f32 %v227, %v245
    %v256 = vadd.f32 %v228, %v254
    %v257 = vsub.f32 0.0, %v255
    %v258 = vsub.f32 0.0, %v256
    %v259 = vmul.f32 %v257, 1.442695
    %v260 = vpow.pop %v259
    %v261 = vmul.f32 %v258, 1.442695
    %v262 = vpow.pop %v261
    %v263 = vsub.f32 1.0, %v260
    %v264 = vsub.f32 1.0, %v262
    %v265 = vmul.f32 %v263, %v263
    %v266 = vmul.f32 %v264, %v264
    %v267 = vmul.f32 %v265, %v255
    %v268 = vmul.f32 %v266, %v256
    %v269 = vadd.f32 %v267, %v268
    %s270 = scalar_lea.vmem [#allocation10], 16
    %v271 = vld [vmem:[%s270] sm:$0xff]
    %v272 = vadd.f32 %v271, %v269
    %273 = vst [vmem:[%s270] sm:$0xff] %v272
    // Predicated region
    $region38: #{tpu_custom_call.1} parent=1 // pred_check
      _
    $region39: #{tpu_custom_call.1} parent=1 // pred_check_branch
      %275 = sbr.rel (0) target = $region41
    $region40: #{tpu_custom_call.1} parent=1 // pred_region
      %277 = vsyncadd [#allocation4], 0
      %s278 = sshll.u32 [#allocation10], 4
      %s279 = int_to_ptr.vmem [resolvable:$true] %s278
      %s280 = sshll.u32 %s4, 4
      %s281 = int_to_ptr.hbm [resolvable:$true] %s280
      %286 = dma.vmem_to_hbm [thread:$0]  %s279, 384, %s281, [#allocation4], 128, 128, 8
    $region41: #{tpu_custom_call.1} parent=1 // pred_fallthru
      _
    // Predicated region
    $region42: #{tpu_custom_call.1} parent=1 // pred_check
      _
    $region43: #{tpu_custom_call.1} parent=1 // pred_check_branch
      %288 = sbr.rel (0) target = $region45
    $region44: #{tpu_custom_call.1} parent=1 // pred_region
      %290 = dma.done [#allocation4], 384
    $region45: #{tpu_custom_call.1} parent=1 // pred_fallthru
      _
    %291 = vsyncpa [#allocation3], 1
    %292 = vsyncpa [#allocation6], 1
    %293 = vsyncpa [#allocation9], 1
    %294 = vsyncpa [#allocation4], 1

</llo_original>
